<compile_context>
chip_gen: v7x
topology: tpu7x:2x2x1
jax: 0.10.0
libtpu: 0.0.40
codegen_flags: <defaults>
</compile_context>

<pallas_src>
import math
from functools import partial

import numpy as np
import jax
import jax.numpy as jnp
from jax import lax
from jax.experimental import pallas as pl
from jax.experimental.pallas import tpu as pltpu


def _round_up(x, m):
    return ((x + m - 1) // m) * m


def _vmem_capacity_bytes():
    """Per-TensorCore VMEM capacity; conservative fallback if unqueryable."""
    try:
        return int(pltpu.get_tpu_info().vmem_capacity_bytes)
    except Exception:
        return 64 * 1024 * 1024          # v7x per-TC VMEM (smallest generation)


def _per_step_vmem_bytes(nb, nlat_p, nlon, lmax_pad, two_m, in_itemsize):
    """Conservative per-grid-step VMEM footprint (double-buffered tiles)."""
    x_tile = 2 * nb * nlat_p * nlon * in_itemsize          # input (2 buffers)
    out_tile = 2 * nb * lmax_pad * two_m * 4               # f32 output (2 buffers)
    s1 = nb * nlat_p * two_m * (4 + in_itemsize)           # f32 acc + scratch copy
    g = 2 * lmax_pad * two_m * 4                           # per-slice stage-2 result
    weights = 2 * (nlon * two_m + 2 * lmax_pad * nlat_p) * in_itemsize
    return x_tile + out_tile + s1 + g + weights


def _pick_block_batch(N, per_step_bytes_fn, budget_bytes):
    """Largest divisor of N fitting the VMEM budget while keeping >= 4 grid
    steps (>= 2 per TensorCore under megacore) whenever N allows.

    NB=1 is the floor; if even that exceeds the budget, the wrapper's
    vmem_limit is derived from the actual NB=1 footprint so the plan is
    never silently violated.
    """
    min_steps = 4 if N >= 4 else N
    best = 1
    for d in range(1, N + 1):
        if N % d:
            continue
        if N // d < max(min_steps, 1):
            continue
        if per_step_bytes_fn(d) <= budget_bytes:
            best = max(best, d)
    return best


def _rfft2_kernel(x_ref, wc_ref, ff_ref, o_ref, s1_ref, *, compute_dtype):
    nb, nlat_p, nlon = x_ref.shape
    lmax_pad = o_ref.shape[1]
    two_m = o_ref.shape[2]
    mmax_pad = two_m // 2

    # ---- stage 1: rfft along nlon for all nb*nlat_p rows in one matmul.
    # nlat_p % 8 == 0, so the merge of (nb, nlat_p) is a free view.
    x2 = x_ref[...].reshape(nb * nlat_p, nlon)
    s1 = jnp.dot(x2, wc_ref[...], preferred_element_type=jnp.float32)  # [R1|I1]
    # NOTE: re-quantizes the stage-1 intermediate when compute_dtype is bf16
    # (second rounding step); validated against the bf16 tolerance below.
    s1_ref[...] = s1.astype(compute_dtype).reshape(nb, nlat_p, two_m)

    ff = ff_ref[...]          # [Frs ; Fis] (2*lmax_pad, nlat_p); 'ortho' scale folded in

    # ---- stage 2: one MXU matmul per slice against the row-stacked weight.
    #   G = [[Frs@R1, Frs@I1], [Fis@R1, Fis@I1]]
    def body(b, carry):
        g = jnp.dot(ff, s1_ref[b], preferred_element_type=jnp.float32)
        re = g[:lmax_pad, :mmax_pad] - g[lmax_pad:, mmax_pad:]
        im = g[:lmax_pad, mmax_pad:] + g[lmax_pad:, :mmax_pad]
        o_ref[b, :, :mmax_pad] = re          # lane-dense, 128-aligned stores
        o_ref[b, :, mmax_pad:] = im
        return carry

    lax.fori_loop(0, nb, body, 0, unroll=nb <= 8)


def real_fft2(x, nlat, nlon, lmax=None, mmax=None, compute_dtype=jnp.bfloat16):
    """JAX/Pallas equivalent of makani RealFFT2.forward.

    x: real array of shape (..., nlat, nlon)  (NCHW when 4-D).
    Returns complex64 array of shape (..., lmax, mmax).
    compute_dtype: jnp.bfloat16 (default; bf16 MXU operands, f32 accumulation)
      or jnp.float32 (exact fallback; ~3x more MXU cycles on v5e/v6e/v7x).
    """
    lmax = min(lmax or nlat, nlat)
    mmax = min(mmax or nlon // 2 + 1, nlon // 2 + 1)
    lmax_high = math.ceil(lmax / 2)
    lmax_low = math.floor(lmax / 2)
    lmax_out = lmax_high + lmax_low

    # TODO(synk): torch.fft.rfft2 with s=(nlat, nlon) zero-pads/crops mismatched
    # spatial inputs; here the spatial shape must already match.
    assert x.shape[-2] == nlat and x.shape[-1] == nlon

    # Padded extents: free reshapes (nlat_p), lane-dense stores (mmax_pad),
    # sublane-aligned row slices (lmax_pad).
    nlat_p = _round_up(nlat, 8)
    mmax_pad = _round_up(mmax, 128)
    lmax_pad = _round_up(lmax_out, 8)
    two_m = 2 * mmax_pad
    # TODO(synk): for mmax << 128 this writes up to ~18x more output lanes than
    # needed; a round_up(2*mmax, 128) packing would cut writeback for tiny mmax.

    in_itemsize = jnp.dtype(compute_dtype).itemsize
    scale = 1.0 / math.sqrt(nlat * nlon)          # 'ortho' norm, folded into FF

    # --- DFT matrices (built in float64, cast to the MXU compute dtype) -----
    n = np.arange(nlon)
    m = np.arange(mmax)
    ang_w = 2.0 * np.pi * np.outer(n, m) / nlon
    Wc = np.zeros((nlon, two_m), dtype=np.float64)
    Wc[:, :mmax] = np.cos(ang_w)                          # Wr
    Wc[:, mmax_pad:mmax_pad + mmax] = -np.sin(ang_w)      # Wi

    k = np.concatenate([np.arange(lmax_high), np.arange(nlat - lmax_low, nlat)])
    l = np.arange(nlat)
    ang_f = 2.0 * np.pi * np.outer(k, l) / nlat
    FF = np.zeros((2 * lmax_pad, nlat_p), dtype=np.float64)   # [Frs ; Fis]
    FF[:lmax_out, :nlat] = np.cos(ang_f) * scale              # Frs
    FF[lmax_pad:lmax_pad + lmax_out, :nlat] = -np.sin(ang_f) * scale  # Fis

    Wc = jnp.asarray(Wc, dtype=compute_dtype)
    FF = jnp.asarray(FF, dtype=compute_dtype)

    lead = x.shape[:-2]
    N = int(np.prod(lead)) if lead else 1
    xf = jnp.reshape(x, (N, nlat, nlon)).astype(compute_dtype)
    if nlat_p != nlat:       # zero rows: exact (matching FF columns are zero)
        xf = jnp.pad(xf, ((0, 0), (0, nlat_p - nlat), (0, 0)))

    # --- generation-aware VMEM plan ------------------------------------------
    vmem_cap = _vmem_capacity_bytes()
    per_step = lambda nb: _per_step_vmem_bytes(nb, nlat_p, nlon, lmax_pad,
                                               two_m, in_itemsize)
    NB = _pick_block_batch(N, per_step, int(0.70 * vmem_cap))
    grid = (N // NB,)
    vmem_limit = int(min(vmem_cap - (2 << 20),
                         max(32 << 20, per_step(NB) + (8 << 20))))

    cost = pl.CostEstimate(
        flops=2 * N * nlat_p * two_m * (nlon + 2 * lmax_pad),
        transcendentals=0,
        bytes_accessed=int(xf.size * in_itemsize + N * lmax_pad * two_m * 4
                           + Wc.size * in_itemsize + FF.size * in_itemsize),
    )

    kernel = partial(_rfft2_kernel, compute_dtype=compute_dtype)
    out_spec = pl.BlockSpec((NB, lmax_pad, two_m), lambda i: (i, 0, 0))

    def _call(optimized):
        # Grid-invariant weights: single-buffer to halve their VMEM footprint.
        wkw = {"pipeline_mode": pl.Buffered(1)} if optimized else {}
        extra = {"cost_estimate": cost} if optimized else {}
        in_specs = [
            pl.BlockSpec((NB, nlat_p, nlon), lambda i: (i, 0, 0)),
            pl.BlockSpec((nlon, two_m), lambda i: (0, 0), **wkw),
            pl.BlockSpec((2 * lmax_pad, nlat_p), lambda i: (0, 0), **wkw),
        ]
        return pl.pallas_call(
            kernel,
            out_shape=jax.ShapeDtypeStruct((N, lmax_pad, two_m), jnp.float32),
            grid_spec=pltpu.PrefetchScalarGridSpec(
                num_scalar_prefetch=0,
                grid=grid,
                in_specs=in_specs,
                out_specs=out_spec,
                scratch_shapes=[pltpu.VMEM((NB, nlat_p, two_m), compute_dtype)],
            ),
            compiler_params=pltpu.CompilerParams(
                dimension_semantics=("parallel",),
                vmem_limit_bytes=vmem_limit,
            ),
            **extra,
        )(xf, Wc, FF)

    try:
        out = _call(True)
    except Exception:
        # Portability fallback if pl.Buffered(1)/cost_estimate is unsupported
        # by the installed JAX version; identical math.
        out = _call(False)

    # Strip lane/sublane padding and complexify outside the kernel.
    yr = out[:, :lmax_out, :mmax]
    yi = out[:, :lmax_out, mmax_pad:mmax_pad + mmax]
    y = lax.complex(yr, yi)                           # complex64
    return jnp.reshape(y, lead + (lmax_out, mmax))


if __name__ == "__main__":
    B, C, nlat, nlon = 2, 4, 16, 16
    lmax, mmax = 12, 7                                # exercise truncation

    key = jax.random.PRNGKey(0)
    x = jax.random.normal(key, (B, C, nlat, nlon), dtype=jnp.float32)

    # Reference: jnp.fft.rfft2 + the same truncation the torch module applies.
    lmax_high = math.ceil(lmax / 2)
    lmax_low = math.floor(lmax / 2)
    yref = jnp.fft.rfft2(x, s=(nlat, nlon), axes=(-2, -1), norm="ortho")
    yref = jnp.concatenate(
        (yref[..., :lmax_high, :mmax], yref[..., nlat - lmax_low:, :mmax]),
        axis=-2,
    )
    yref = np.asarray(yref)

    # Default path: bf16 MXU operands with f32 accumulation.
    y_bf16 = jax.block_until_ready(real_fft2(x, nlat, nlon, lmax=lmax, mmax=mmax))
    assert y_bf16.shape == (B, C, lmax, mmax)
    assert y_bf16.dtype == jnp.complex64
    np.testing.assert_allclose(np.asarray(y_bf16), yref, rtol=2e-2, atol=2e-2)

    # f32 fallback path: tight tolerance.
    y_f32 = jax.block_until_ready(
        real_fft2(x, nlat, nlon, lmax=lmax, mmax=mmax,
                  compute_dtype=jnp.float32))
    np.testing.assert_allclose(np.asarray(y_f32), yref, rtol=1e-3, atol=1e-3)

    print("KERNEL_OK")
</pallas_src>

<mosaic_0001>
module attributes {stable_mosaic.version = 11 : i64} {
  func.func @_rfft2_kernel(%arg0: i32, %arg1: memref<2x16x16xbf16, #tpu.memory_space<vmem>>, %arg2: memref<16x256xbf16, #tpu.memory_space<vmem>>, %arg3: memref<32x16xbf16, #tpu.memory_space<vmem>>, %arg4: memref<2x16x256xf32, #tpu.memory_space<vmem>>, %arg5: memref<2x16x256xbf16, #tpu.memory_space<vmem>>) attributes {dimension_semantics = [#tpu.dimension_semantics<parallel>], iteration_bounds = array<i64: 4>, scalar_prefetch = 0 : i64, scratch_operands = 1 : i64, tpu.core_type = #tpu.core_type<tc>, window_params = [{transform_indices = @transform_0, window_bounds = array<i64: 2, 16, 16>}, {pipeline_mode = #tpu.pipeline_mode<synchronous>, transform_indices = @transform_1, window_bounds = array<i64: 16, 256>}, {pipeline_mode = #tpu.pipeline_mode<synchronous>, transform_indices = @transform_2, window_bounds = array<i64: 32, 16>}, {transform_indices = @transform_3, window_bounds = array<i64: 2, 16, 256>}]} {
    %c0 = arith.constant 0 : index
    %c0_0 = arith.constant 0 : index
    %c0_1 = arith.constant 0 : index
    %0 = vector.load %arg1[%c0, %c0_0, %c0_1] : memref<2x16x16xbf16, #tpu.memory_space<vmem>>, vector<2x16x16xbf16>
    %1 = vector.shape_cast %0 : vector<2x16x16xbf16> to vector<32x16xbf16>
    %c0_2 = arith.constant 0 : index
    %c0_3 = arith.constant 0 : index
    %2 = vector.load %arg2[%c0_2, %c0_3] : memref<16x256xbf16, #tpu.memory_space<vmem>>, vector<16x256xbf16>
    %cst = arith.constant dense<0.000000e+00> : vector<32x256xf32>
    %3 = tpu.matmul %1, %2, %cst {dimension_numbers = #tpu.dot_dimension_numbers<[1], [0], [0], [1], [0, 0, 1, 1], [], []>} : vector<32x16xbf16>, vector<16x256xbf16>, vector<32x256xf32> -> vector<32x256xf32>
    %4 = arith.truncf %3 : vector<32x256xf32> to vector<32x256xbf16>
    %5 = vector.shape_cast %4 : vector<32x256xbf16> to vector<2x16x256xbf16>
    %c0_4 = arith.constant 0 : index
    %c0_5 = arith.constant 0 : index
    %c0_6 = arith.constant 0 : index
    %6 = vector.load %arg5[%c0_4, %c0_5, %c0_6] : memref<2x16x256xbf16, #tpu.memory_space<vmem>>, vector<2x16x256xbf16>
    tpu.vector_store %arg5[%c0_4, %c0_5, %c0_6], %5 {strides = array<i32>} : memref<2x16x256xbf16, #tpu.memory_space<vmem>>, vector<2x16x256xbf16>,
    %c0_7 = arith.constant 0 : index
    %c0_8 = arith.constant 0 : index
    %7 = vector.load %arg3[%c0_7, %c0_8] : memref<32x16xbf16, #tpu.memory_space<vmem>>, vector<32x16xbf16>
    %c0_i32 = arith.constant 0 : i32
    %8 = arith.index_cast %c0_i32 : i32 to index
    %c0_9 = arith.constant 0 : index
    %c0_10 = arith.constant 0 : index
    %9 = vector.load %arg5[%8, %c0_9, %c0_10] : memref<2x16x256xbf16, #tpu.memory_space<vmem>>, vector<1x16x256xbf16>
    %10 = vector.shape_cast %9 : vector<1x16x256xbf16> to vector<16x256xbf16>
    %cst_11 = arith.constant dense<0.000000e+00> : vector<32x256xf32>
    %11 = tpu.matmul %7, %10, %cst_11 {dimension_numbers = #tpu.dot_dimension_numbers<[1], [0], [0], [1], [0, 0, 1, 1], [], []>} : vector<32x16xbf16>, vector<16x256xbf16>, vector<32x256xf32> -> vector<32x256xf32>
    %12 = vector.extract_strided_slice %11 {offsets = [0, 0], sizes = [16, 128], strides = [1, 1]} : vector<32x256xf32> to vector<16x128xf32>
    %13 = vector.extract_strided_slice %11 {offsets = [16, 128], sizes = [16, 128], strides = [1, 1]} : vector<32x256xf32> to vector<16x128xf32>
    %14 = arith.subf %12, %13 : vector<16x128xf32>
    %15 = vector.extract_strided_slice %11 {offsets = [0, 128], sizes = [16, 128], strides = [1, 1]} : vector<32x256xf32> to vector<16x128xf32>
    %16 = vector.extract_strided_slice %11 {offsets = [16, 0], sizes = [16, 128], strides = [1, 1]} : vector<32x256xf32> to vector<16x128xf32>
    %17 = arith.addf %15, %16 : vector<16x128xf32>
    %18 = arith.index_cast %c0_i32 : i32 to index
    %c0_12 = arith.constant 0 : index
    %c0_13 = arith.constant 0 : index
    %19 = vector.load %arg4[%18, %c0_12, %c0_13] : memref<2x16x256xf32, #tpu.memory_space<vmem>>, vector<1x16x128xf32>
    %20 = vector.shape_cast %19 : vector<1x16x128xf32> to vector<16x128xf32>
    %21 = vector.shape_cast %14 : vector<16x128xf32> to vector<1x16x128xf32>
    tpu.vector_store %arg4[%18, %c0_12, %c0_13], %21 {strides = array<i32>} : memref<2x16x256xf32, #tpu.memory_space<vmem>>, vector<1x16x128xf32>,
    %22 = arith.index_cast %c0_i32 : i32 to index
    %c0_14 = arith.constant 0 : index
    %c128 = arith.constant 128 : index
    %23 = vector.load %arg4[%22, %c0_14, %c128] : memref<2x16x256xf32, #tpu.memory_space<vmem>>, vector<1x16x128xf32>
    %24 = vector.shape_cast %23 : vector<1x16x128xf32> to vector<16x128xf32>
    %25 = vector.shape_cast %17 : vector<16x128xf32> to vector<1x16x128xf32>
    tpu.vector_store %arg4[%22, %c0_14, %c128], %25 {strides = array<i32>} : memref<2x16x256xf32, #tpu.memory_space<vmem>>, vector<1x16x128xf32>,
    %c1_i32 = arith.constant 1 : i32
    %26 = arith.index_cast %c1_i32 : i32 to index
    %c0_15 = arith.constant 0 : index
    %c0_16 = arith.constant 0 : index
    %27 = vector.load %arg5[%26, %c0_15, %c0_16] : memref<2x16x256xbf16, #tpu.memory_space<vmem>>, vector<1x16x256xbf16>
    %28 = vector.shape_cast %27 : vector<1x16x256xbf16> to vector<16x256xbf16>
    %cst_17 = arith.constant dense<0.000000e+00> : vector<32x256xf32>
    %29 = tpu.matmul %7, %28, %cst_17 {dimension_numbers = #tpu.dot_dimension_numbers<[1], [0], [0], [1], [0, 0, 1, 1], [], []>} : vector<32x16xbf16>, vector<16x256xbf16>, vector<32x256xf32> -> vector<32x256xf32>
    %30 = vector.extract_strided_slice %29 {offsets = [0, 0], sizes = [16, 128], strides = [1, 1]} : vector<32x256xf32> to vector<16x128xf32>
    %31 = vector.extract_strided_slice %29 {offsets = [16, 128], sizes = [16, 128], strides = [1, 1]} : vector<32x256xf32> to vector<16x128xf32>
    %32 = arith.subf %30, %31 : vector<16x128xf32>
    %33 = vector.extract_strided_slice %29 {offsets = [0, 128], sizes = [16, 128], strides = [1, 1]} : vector<32x256xf32> to vector<16x128xf32>
    %34 = vector.extract_strided_slice %29 {offsets = [16, 0], sizes = [16, 128], strides = [1, 1]} : vector<32x256xf32> to vector<16x128xf32>
    %35 = arith.addf %33, %34 : vector<16x128xf32>
    %36 = arith.index_cast %c1_i32 : i32 to index
    %c0_18 = arith.constant 0 : index
    %c0_19 = arith.constant 0 : index
    %37 = vector.load %arg4[%36, %c0_18, %c0_19] : memref<2x16x256xf32, #tpu.memory_space<vmem>>, vector<1x16x128xf32>
    %38 = vector.shape_cast %37 : vector<1x16x128xf32> to vector<16x128xf32>
    %39 = vector.shape_cast %32 : vector<16x128xf32> to vector<1x16x128xf32>
    tpu.vector_store %arg4[%36, %c0_18, %c0_19], %39 {strides = array<i32>} : memref<2x16x256xf32, #tpu.memory_space<vmem>>, vector<1x16x128xf32>,
    %40 = arith.index_cast %c1_i32 : i32 to index
    %c0_20 = arith.constant 0 : index
    %c128_21 = arith.constant 128 : index
    %41 = vector.load %arg4[%40, %c0_20, %c128_21] : memref<2x16x256xf32, #tpu.memory_space<vmem>>, vector<1x16x128xf32>
    %42 = vector.shape_cast %41 : vector<1x16x128xf32> to vector<16x128xf32>
    %43 = vector.shape_cast %35 : vector<16x128xf32> to vector<1x16x128xf32>
    tpu.vector_store %arg4[%40, %c0_20, %c128_21], %43 {strides = array<i32>} : memref<2x16x256xf32, #tpu.memory_space<vmem>>, vector<1x16x128xf32>,
    %c2_i32 = arith.constant 2 : i32
    return
  }
  func.func @transform_0(%arg0: i32) -> (i32, i32, i32) {
    %c0_i32 = arith.constant 0 : i32
    %c0_i32_0 = arith.constant 0 : i32
    %c0_i32_1 = arith.constant 0 : i32
    return %arg0, %c0_i32, %c0_i32_0 : i32, i32, i32
  }
  func.func @transform_1(%arg0: i32) -> (i32, i32) {
    %c0_i32 = arith.constant 0 : i32
    %c0_i32_0 = arith.constant 0 : i32
    %c0_i32_1 = arith.constant 0 : i32
    return %c0_i32, %c0_i32_0 : i32, i32
  }
  func.func @transform_2(%arg0: i32) -> (i32, i32) {
    %c0_i32 = arith.constant 0 : i32
    %c0_i32_0 = arith.constant 0 : i32
    %c0_i32_1 = arith.constant 0 : i32
    return %c0_i32, %c0_i32_0 : i32, i32
  }
  func.func @transform_3(%arg0: i32) -> (i32, i32, i32) {
    %c0_i32 = arith.constant 0 : i32
    %c0_i32_0 = arith.constant 0 : i32
    %c0_i32_1 = arith.constant 0 : i32
    return %arg0, %c0_i32, %c0_i32_0 : i32, i32, i32
  }
}

module attributes {stable_mosaic.version = 11 : i64} {
  func.func @_rfft2_kernel(%arg0: i32, %arg1: memref<2x16x16xbf16, #tpu.memory_space<vmem>>, %arg2: memref<16x256xbf16, #tpu.memory_space<vmem>>, %arg3: memref<32x16xbf16, #tpu.memory_space<vmem>>, %arg4: memref<2x16x256xf32, #tpu.memory_space<vmem>>, %arg5: memref<2x16x256xbf16, #tpu.memory_space<vmem>>) attributes {dimension_semantics = [#tpu.dimension_semantics<parallel>], iteration_bounds = array<i64: 4>, scalar_prefetch = 0 : i64, scratch_operands = 1 : i64, tpu.core_type = #tpu.core_type<tc>, window_params = [{transform_indices = @transform_0, window_bounds = array<i64: 2, 16, 16>}, {pipeline_mode = #tpu.pipeline_mode<synchronous>, transform_indices = @transform_1, window_bounds = array<i64: 16, 256>}, {pipeline_mode = #tpu.pipeline_mode<synchronous>, transform_indices = @transform_2, window_bounds = array<i64: 32, 16>}, {transform_indices = @transform_3, window_bounds = array<i64: 2, 16, 256>}]} {
    %c0 = arith.constant 0 : index
    %c0_0 = arith.constant 0 : index
    %c0_1 = arith.constant 0 : index
    %0 = vector.load %arg1[%c0, %c0_0, %c0_1] : memref<2x16x16xbf16, #tpu.memory_space<vmem>>, vector<2x16x16xbf16>
    %1 = vector.shape_cast %0 : vector<2x16x16xbf16> to vector<32x16xbf16>
    %c0_2 = arith.constant 0 : index
    %c0_3 = arith.constant 0 : index
    %2 = vector.load %arg2[%c0_2, %c0_3] : memref<16x256xbf16, #tpu.memory_space<vmem>>, vector<16x256xbf16>
    %cst = arith.constant dense<0.000000e+00> : vector<32x256xf32>
    %3 = tpu.matmul %1, %2, %cst {dimension_numbers = #tpu.dot_dimension_numbers<[1], [0], [0], [1], [0, 0, 1, 1], [], []>} : vector<32x16xbf16>, vector<16x256xbf16>, vector<32x256xf32> -> vector<32x256xf32>
    %4 = arith.truncf %3 : vector<32x256xf32> to vector<32x256xbf16>
    %5 = vector.shape_cast %4 : vector<32x256xbf16> to vector<2x16x256xbf16>
    %c0_4 = arith.constant 0 : index
    %c0_5 = arith.constant 0 : index
    %c0_6 = arith.constant 0 : index
    %6 = vector.load %arg5[%c0_4, %c0_5, %c0_6] : memref<2x16x256xbf16, #tpu.memory_space<vmem>>, vector<2x16x256xbf16>
    tpu.vector_store %arg5[%c0_4, %c0_5, %c0_6], %5 {strides = array<i32>} : memref<2x16x256xbf16, #tpu.memory_space<vmem>>, vector<2x16x256xbf16>,
    %c0_7 = arith.constant 0 : index
    %c0_8 = arith.constant 0 : index
    %7 = vector.load %arg3[%c0_7, %c0_8] : memref<32x16xbf16, #tpu.memory_space<vmem>>, vector<32x16xbf16>
    %c0_i32 = arith.constant 0 : i32
    %8 = arith.index_cast %c0_i32 : i32 to index
    %c0_9 = arith.constant 0 : index
    %c0_10 = arith.constant 0 : index
    %9 = vector.load %arg5[%8, %c0_9, %c0_10] : memref<2x16x256xbf16, #tpu.memory_space<vmem>>, vector<1x16x256xbf16>
    %10 = vector.shape_cast %9 : vector<1x16x256xbf16> to vector<16x256xbf16>
    %cst_11 = arith.constant dense<0.000000e+00> : vector<32x256xf32>
    %11 = tpu.matmul %7, %10, %cst_11 {dimension_numbers = #tpu.dot_dimension_numbers<[1], [0], [0], [1], [0, 0, 1, 1], [], []>} : vector<32x16xbf16>, vector<16x256xbf16>, vector<32x256xf32> -> vector<32x256xf32>
    %12 = vector.extract_strided_slice %11 {offsets = [0, 0], sizes = [16, 128], strides = [1, 1]} : vector<32x256xf32> to vector<16x128xf32>
    %13 = vector.extract_strided_slice %11 {offsets = [16, 128], sizes = [16, 128], strides = [1, 1]} : vector<32x256xf32> to vector<16x128xf32>
    %14 = arith.subf %12, %13 : vector<16x128xf32>
    %15 = vector.extract_strided_slice %11 {offsets = [0, 128], sizes = [16, 128], strides = [1, 1]} : vector<32x256xf32> to vector<16x128xf32>
    %16 = vector.extract_strided_slice %11 {offsets = [16, 0], sizes = [16, 128], strides = [1, 1]} : vector<32x256xf32> to vector<16x128xf32>
    %17 = arith.addf %15, %16 : vector<16x128xf32>
    %18 = arith.index_cast %c0_i32 : i32 to index
    %c0_12 = arith.constant 0 : index
    %c0_13 = arith.constant 0 : index
    %19 = vector.load %arg4[%18, %c0_12, %c0_13] : memref<2x16x256xf32, #tpu.memory_space<vmem>>, vector<1x16x128xf32>
    %20 = vector.shape_cast %19 : vector<1x16x128xf32> to vector<16x128xf32>
    %21 = vector.shape_cast %14 : vector<16x128xf32> to vector<1x16x128xf32>
    tpu.vector_store %arg4[%18, %c0_12, %c0_13], %21 {strides = array<i32>} : memref<2x16x256xf32, #tpu.memory_space<vmem>>, vector<1x16x128xf32>,
    %22 = arith.index_cast %c0_i32 : i32 to index
    %c0_14 = arith.constant 0 : index
    %c128 = arith.constant 128 : index
    %23 = vector.load %arg4[%22, %c0_14, %c128] : memref<2x16x256xf32, #tpu.memory_space<vmem>>, vector<1x16x128xf32>
    %24 = vector.shape_cast %23 : vector<1x16x128xf32> to vector<16x128xf32>
    %25 = vector.shape_cast %17 : vector<16x128xf32> to vector<1x16x128xf32>
    tpu.vector_store %arg4[%22, %c0_14, %c128], %25 {strides = array<i32>} : memref<2x16x256xf32, #tpu.memory_space<vmem>>, vector<1x16x128xf32>,
    %c1_i32 = arith.constant 1 : i32
    %26 = arith.index_cast %c1_i32 : i32 to index
    %c0_15 = arith.constant 0 : index
    %c0_16 = arith.constant 0 : index
    %27 = vector.load %arg5[%26, %c0_15, %c0_16] : memref<2x16x256xbf16, #tpu.memory_space<vmem>>, vector<1x16x256xbf16>
    %28 = vector.shape_cast %27 : vector<1x16x256xbf16> to vector<16x256xbf16>
    %cst_17 = arith.constant dense<0.000000e+00> : vector<32x256xf32>
    %29 = tpu.matmul %7, %28, %cst_17 {dimension_numbers = #tpu.dot_dimension_numbers<[1], [0], [0], [1], [0, 0, 1, 1], [], []>} : vector<32x16xbf16>, vector<16x256xbf16>, vector<32x256xf32> -> vector<32x256xf32>
    %30 = vector.extract_strided_slice %29 {offsets = [0, 0], sizes = [16, 128], strides = [1, 1]} : vector<32x256xf32> to vector<16x128xf32>
    %31 = vector.extract_strided_slice %29 {offsets = [16, 128], sizes = [16, 128], strides = [1, 1]} : vector<32x256xf32> to vector<16x128xf32>
    %32 = arith.subf %30, %31 : vector<16x128xf32>
    %33 = vector.extract_strided_slice %29 {offsets = [0, 128], sizes = [16, 128], strides = [1, 1]} : vector<32x256xf32> to vector<16x128xf32>
    %34 = vector.extract_strided_slice %29 {offsets = [16, 0], sizes = [16, 128], strides = [1, 1]} : vector<32x256xf32> to vector<16x128xf32>
    %35 = arith.addf %33, %34 : vector<16x128xf32>
    %36 = arith.index_cast %c1_i32 : i32 to index
    %c0_18 = arith.constant 0 : index
    %c0_19 = arith.constant 0 : index
    %37 = vector.load %arg4[%36, %c0_18, %c0_19] : memref<2x16x256xf32, #tpu.memory_space<vmem>>, vector<1x16x128xf32>
    %38 = vector.shape_cast %37 : vector<1x16x128xf32> to vector<16x128xf32>
    %39 = vector.shape_cast %32 : vector<16x128xf32> to vector<1x16x128xf32>
    tpu.vector_store %arg4[%36, %c0_18, %c0_19], %39 {strides = array<i32>} : memref<2x16x256xf32, #tpu.memory_space<vmem>>, vector<1x16x128xf32>,
    %40 = arith.index_cast %c1_i32 : i32 to index
    %c0_20 = arith.constant 0 : index
    %c128_21 = arith.constant 128 : index
    %41 = vector.load %arg4[%40, %c0_20, %c128_21] : memref<2x16x256xf32, #tpu.memory_space<vmem>>, vector<1x16x128xf32>
    %42 = vector.shape_cast %41 : vector<1x16x128xf32> to vector<16x128xf32>
    %43 = vector.shape_cast %35 : vector<16x128xf32> to vector<1x16x128xf32>
    tpu.vector_store %arg4[%40, %c0_20, %c128_21], %43 {strides = array<i32>} : memref<2x16x256xf32, #tpu.memory_space<vmem>>, vector<1x16x128xf32>,
    %c2_i32 = arith.constant 2 : i32
    return
  }
  func.func @transform_0(%arg0: i32) -> (i32, i32, i32) {
    %c0_i32 = arith.constant 0 : i32
    %c0_i32_0 = arith.constant 0 : i32
    %c0_i32_1 = arith.constant 0 : i32
    return %arg0, %c0_i32, %c0_i32_0 : i32, i32, i32
  }
  func.func @transform_1(%arg0: i32) -> (i32, i32) {
    %c0_i32 = arith.constant 0 : i32
    %c0_i32_0 = arith.constant 0 : i32
    %c0_i32_1 = arith.constant 0 : i32
    return %c0_i32, %c0_i32_0 : i32, i32
  }
  func.func @transform_2(%arg0: i32) -> (i32, i32) {
    %c0_i32 = arith.constant 0 : i32
    %c0_i32_0 = arith.constant 0 : i32
    %c0_i32_1 = arith.constant 0 : i32
    return %c0_i32, %c0_i32_0 : i32, i32
  }
  func.func @transform_3(%arg0: i32) -> (i32, i32, i32) {
    %c0_i32 = arith.constant 0 : i32
    %c0_i32_0 = arith.constant 0 : i32
    %c0_i32_1 = arith.constant 0 : i32
    return %arg0, %c0_i32, %c0_i32_0 : i32, i32, i32
  }
}

</mosaic_0001>

<llo_original>
// kernel: tpu_custom_call.1
$region0: #{tpu_custom_call.1}
  #allocation0 [shape = 'u32[]', space=smem, size = 0x4, offset = 0x4, fixed_abs, tag = 'smem constant byte address 0x4 - core index']
  #allocation1 [shape = 'u32[144,128]{1,0:T(1,128)}', space=vmem, size = 0x12000, scoped, tag = 'internal scratch']
  #allocation2 [shape = 'bf16[2,16,256]{2,1,0:T(16,128)(2,1)}', space=vmem, size = 0x4000, scoped, tag = 'scratch operand']
  %s0 = inlined_call_operand.hbm [shape: bf16[8,16,16], index: 0, kind: input, shape index: {}]
  %s1 = inlined_call_operand.vmem [shape: bf16[16,256], index: 1, kind: input, shape index: {}]
  %s2 = inlined_call_operand.vmem [shape: bf16[32,16], index: 2, kind: input, shape index: {}]
  %s3 = inlined_call_operand.hbm [shape: f32[8,16,256], index: 3, kind: output, shape index: {}]
  %s4 = sld [smem:[#allocation0]]
  $region49: #{tpu_custom_call.1} parent=0
    _
  %s6 = ssub.s32 1, %s4
  %s7 = scalar_select 0, %s6, %s4
  $region1: #{tpu_custom_call.1} parent=0
    #allocation3 [shape = 'u8[16384]{0}', space=vmem, size = 0x4000, scoped, tag = 'input window, operand 0']
    #allocation4 [shape = 's32[2]{0}', space=sflag, size = 0x8, scoped, tag = 'scoped memory for tpu_custom_call.1']
    #allocation5 [shape = 's32[2]{0}', space=sflag, size = 0x8, scoped, tag = 'scoped memory for tpu_custom_call.1']
    #allocation6 [shape = 'u8[65536]{0}', space=vmem, size = 0x10000, scoped, tag = 'output window, operand 0']
    %8 = vsyncpa [#allocation4], 0
    %s9 = scalar_lea.sflag [#allocation4], 1
    %10 = vsyncpa %s9, 0
    %11 = vsyncpa [#allocation5], 0
    %s12 = scalar_lea.sflag [#allocation5], 1
    %13 = vsyncpa %s12, 0
    loop: start=0, step=1, limit=6
    $region2: #{tpu_custom_call.1} parent=1 // loop_pre_header
      _
    $region3: #{tpu_custom_call.1} parent=1 // loop_header
      %s15 = sphi 0, %s19
      %p16 = scmp.ge.s32.totalorder %s15, 6
      %s25 = sphi 0, %s27
      %s28 = sphi 0, %s25
      %s29 = sphi 0, %s28
      %s45 = sphi 0, %s29
      %s49 = sphi 0, %s49
      %s51 = sphi 0, %s49
      %s52 = sphi 0, %s51
      %s66 = sphi 0, %s52
      %s70 = sphi 0, %s70
      %s72 = sphi 0, %s70
      %s73 = sphi 0, %s72
      %s87 = sphi 0, %s73
      %s93 = sphi 0, %s95
      %s96 = sphi 0, %s93
      %s97 = sphi 0, %s96
      %s113 = sphi 0, %s97
    $region4: #{tpu_custom_call.1} parent=1 // loop_header_branch
      %18 = sbr.rel (%p16) target = $region8
    $region5: #{tpu_custom_call.1} parent=1 // loop_body
      %s20 = ssub.s32 %s15, 1
      %s21 = ssub.s32 %s15, 2
      %s22 = sadd.s32 %s15, 1
      %s23 = ssub.s32 %s15, %s22
      %p24 = scmp.eq.s32.totalorder %s23, 0
      %s26 = sadd.s32 %s25, 1
      %s27 = scalar_select %p24, %s25, %s26
      %p30 = pneg %p24
      %p31 = scmp.eq.s32.totalorder %s15, 3
      %p32 = por %p30, %p31
      %p33 = scmp.ne.s32.totalorder %s25, %s28
      %p34 = scmp.eq.s32.totalorder %s15, 0
      %p35 = por %p33, %p34
      %p36 = scmp.ne.s32.totalorder %s25, %s28
      %p37 = scmp.eq.s32.totalorder %s20, 3
      %p38 = por %p36, %p37
      %p39 = scmp.ne.s32.totalorder %s28, %s29
      %p40 = scmp.eq.s32.totalorder %s20, 0
      %p41 = por %p39, %p40
      %p42 = scmp.ne.s32.totalorder %s28, %s29
      %p43 = scmp.eq.s32.totalorder %s21, 3
      %p44 = por %p42, %p43
      %p46 = scmp.ne.s32.totalorder %s29, %s45
      %p47 = scmp.eq.s32.totalorder %s21, 0
      %p48 = por %p46, %p47
      %s50 = sadd.s32 %s49, 1
      %p53 = scmp.eq.s32.totalorder %s15, 3
      %p54 = scmp.ne.s32.totalorder %s49, %s51
      %p55 = scmp.eq.s32.totalorder %s15, 0
      %p56 = por %p54, %p55
      %p57 = scmp.ne.s32.totalorder %s49, %s51
      %p58 = scmp.eq.s32.totalorder %s20, 3
      %p59 = por %p57, %p58
      %p60 = scmp.ne.s32.totalorder %s51, %s52
      %p61 = scmp.eq.s32.totalorder %s20, 0
      %p62 = por %p60, %p61
      %p63 = scmp.ne.s32.totalorder %s51, %s52
      %p64 = scmp.eq.s32.totalorder %s21, 3
      %p65 = por %p63, %p64
      %p67 = scmp.ne.s32.totalorder %s52, %s66
      %p68 = scmp.eq.s32.totalorder %s21, 0
      %p69 = por %p67, %p68
      %s71 = sadd.s32 %s70, 1
      %p74 = scmp.eq.s32.totalorder %s15, 3
      %p75 = scmp.ne.s32.totalorder %s70, %s72
      %p76 = scmp.eq.s32.totalorder %s15, 0
      %p77 = por %p75, %p76
      %p78 = scmp.ne.s32.totalorder %s70, %s72
      %p79 = scmp.eq.s32.totalorder %s20, 3
      %p80 = por %p78, %p79
      %p81 = scmp.ne.s32.totalorder %s72, %s73
      %p82 = scmp.eq.s32.totalorder %s20, 0
      %p83 = por %p81, %p82
      %p84 = scmp.ne.s32.totalorder %s72, %s73
      %p85 = scmp.eq.s32.totalorder %s21, 3
      %p86 = por %p84, %p85
      %p88 = scmp.ne.s32.totalorder %s73, %s87
      %p89 = scmp.eq.s32.totalorder %s21, 0
      %p90 = por %p88, %p89
      %s91 = ssub.s32 %s15, %s22
      %p92 = scmp.eq.s32.totalorder %s91, 0
      %s94 = sadd.s32 %s93, 1
      %s95 = scalar_select %p92, %s93, %s94
      %p98 = pneg %p92
      %p99 = scmp.eq.s32.totalorder %s15, 3
      %p100 = por %p98, %p99
      %p101 = scmp.ne.s32.totalorder %s93, %s96
      %p102 = scmp.eq.s32.totalorder %s15, 0
      %p103 = por %p101, %p102
      %p104 = scmp.ne.s32.totalorder %s93, %s96
      %p105 = scmp.eq.s32.totalorder %s20, 3
      %p106 = por %p104, %p105
      %p107 = scmp.ne.s32.totalorder %s96, %s97
      %p108 = scmp.eq.s32.totalorder %s20, 0
      %p109 = por %p107, %p108
      %p110 = scmp.ne.s32.totalorder %s96, %s97
      %p111 = scmp.eq.s32.totalorder %s21, 3
      %p112 = por %p110, %p111
      %p114 = scmp.ne.s32.totalorder %s97, %s113
      %p115 = scmp.eq.s32.totalorder %s21, 0
      %p116 = por %p114, %p115
      %p117 = scmp.le.s32.totalorder 1, %s15
      %p118 = scmp.lt.s32.totalorder %s15, 5
      %p119 = pnand %p117, %p118
      %p120 = pneg %p119
      // Predicated region
      $region9: #{tpu_custom_call.1} parent=5 // pred_check
        _
      $region10: #{tpu_custom_call.1} parent=5 // pred_check_branch
        %122 = sbr.rel (%p119) target = $region12
      $region11: #{tpu_custom_call.1} parent=5 // pred_region
        %s123 = ssub.s32 %s15, 1
        // Predicated region
        $region13: #{tpu_custom_call.1} parent=11 // pred_check
          %p124 = pneg %p62
        $region14: #{tpu_custom_call.1} parent=11 // pred_check_branch
          %126 = sbr.rel (%p124) target = $region16
        $region15: #{tpu_custom_call.1} parent=11 // pred_region
          _
        $region16: #{tpu_custom_call.1} parent=11 // pred_fallthru
          _
        // Predicated region
        $region17: #{tpu_custom_call.1} parent=11 // pred_check
          %p127 = pneg %p83
        $region18: #{tpu_custom_call.1} parent=11 // pred_check_branch
          %129 = sbr.rel (%p127) target = $region20
        $region19: #{tpu_custom_call.1} parent=11 // pred_region
          _
        $region20: #{tpu_custom_call.1} parent=11 // pred_fallthru
          _
      $region12: #{tpu_custom_call.1} parent=5 // pred_fallthru
        _
      %p130 = scmp.lt.s32.totalorder %s15, 4
      // Predicated region
      $region21: #{tpu_custom_call.1} parent=5 // pred_check
        %p131 = pneg %p130
      $region22: #{tpu_custom_call.1} parent=5 // pred_check_branch
        %133 = sbr.rel (%p131) target = $region24
      $region23: #{tpu_custom_call.1} parent=5 // pred_region
        // Predicated region
        $region25: #{tpu_custom_call.1} parent=23 // pred_check
          %p134 = pneg %p35
        $region26: #{tpu_custom_call.1} parent=23 // pred_check_branch
          %136 = sbr.rel (%p134) target = $region28
        $region27: #{tpu_custom_call.1} parent=23 // pred_region
          %s137 = sand.u32 %s25, 1
          %s138 = scalar_lea.sflag [#allocation4], %s137
          %s139 = sand.u32 %s25, 1
          %s140 = smul.addr %s139, 16
          %s141 = scalar_lea.vmem [#allocation3], %s140
          %s142 = smul.u32 2, %s15
          %s144 = ssub.s32 256, 256
          %145 = vsyncadd %s138, %s144
          %s146 = smul.addr %s142, 2
          %s147 = smul.addr %s146, 64
          %s148 = scalar_lea.hbm %s0, %s147
          %s149 = sshll.u32 %s141, 4
          %s150 = int_to_ptr.vmem [resolvable:$true] %s149
          %155 = dma.hbm_to_vmem [thread:$0]  %s148, 256, %s150, %s138, 64, 64, 4
        $region28: #{tpu_custom_call.1} parent=23 // pred_fallthru
          _
      $region24: #{tpu_custom_call.1} parent=5 // pred_fallthru
        _
      %p156 = scmp.le.s32.totalorder 1, %s15
      %p157 = scmp.lt.s32.totalorder %s15, 5
      %p158 = pnand %p156, %p157
      %p159 = pneg %p158
      // Predicated region
      $region29: #{tpu_custom_call.1} parent=5 // pred_check
        _
      $region30: #{tpu_custom_call.1} parent=5 // pred_check_branch
        %161 = sbr.rel (%p158) target = $region32
      $region31: #{tpu_custom_call.1} parent=5 // pred_region
        %s162 = ssub.s32 %s15, 1
        %s163 = sand.u32 %s28, 1
        %s164 = scalar_lea.sflag [#allocation4], %s163
        %s165 = sand.u32 %s28, 1
        %s166 = smul.addr %s165, 16
        %s167 = scalar_lea.vmem [#allocation3], %s166
        // Predicated region
        $region33: #{tpu_custom_call.1} parent=31 // pred_check
          %p168 = pneg %p41
        $region34: #{tpu_custom_call.1} parent=31 // pred_check_branch
          %170 = sbr.rel (%p168) target = $region36
        $region35: #{tpu_custom_call.1} parent=31 // pred_region
          %171 = dma.done %s164, 256
        $region36: #{tpu_custom_call.1} parent=31 // pred_fallthru
          _
        %s172 = sand.u32 %s28, 1
        %s173 = scalar_lea.sflag [#allocation4], %s172
        %s174 = sand.u32 %s28, 1
        %s175 = smul.addr %s174, 16
        %s176 = scalar_lea.vmem [#allocation3], %s175
        %p177 = pneg %p41
        %p178 = pneg %p38
        %p179 = pneg %p62
        %p180 = pneg %p59
        %p181 = pneg %p83
        %p182 = pneg %p80
        %p183 = pneg %p109
        %p184 = pneg %p106
        %s185 = sand.u32 %s96, 1
        %s186 = scalar_lea.sflag [#allocation5], %s185
        %s187 = sand.u32 %s96, 1
        %s188 = smul.addr %s187, 64
        %s189 = scalar_lea.vmem [#allocation6], %s188
        %s190 = smul.u32 2, %s20
        %s191 = smul.u32 2, %s20
        %v193 = vld [vmem:[%s167] sm:$0xf]
        %v194 = vld [vmem:[%s167 + $0x4] sm:$0xf]
        %v195 = vld [vmem:[%s167 + $0x8] sm:$0xf]
        %v196 = vld [vmem:[%s167 + $0xc] sm:$0xf]
        %v197 = vld [vmem:[%s1] sm:$0xff]
        %v198 = vld [vmem:[%s1 + $0x8] sm:$0xff]
        %v203 = vunpack.c.l.b16 %v193
        %v204 = vunpack.c.l.b16 %v194
        %v205 = vunpack.c.l.b16 %v195
        %v206 = vunpack.c.l.b16 %v196
        %v207 = vpack.c.b16 %v204, %v203
        %v208 = vpack.c.b16 %v206, %v205
        %v211 = vunpack.c.l.b16 %v197
        %v212 = vunpack.c.h.b16 %v197
        %v213 = vunpack.c.l.b16 %v198
        %v214 = vunpack.c.h.b16 %v198
        %v215 = vpack.c.b16 %v213, %v211
        %v216 = vpack.c.b16 %v214, %v212
        %vm219 = vcmask 130048
        %v221 = vsel %vm219, %v207, 0
        %v224 = vsel %vm219, %v208, 0
        %226 = vmatprep.subr.bf16.mxu0 %v216
        %227 = vmatpush1.bf16.msra.mxu0 %v215
        %228 = vmatprep.subr.bf16.mxu0 0
        %229 = vmatpush1.bf16.msra.mxu0 0
        %230 = vmatprep.subr.bf16.mxu0 0
        %231 = vmatpush1.bf16.msra.mxu0 0
        %232 = vmatprep.subr.bf16.mxu0 0
        %233 = vmatpush1.bf16.msra.mxu0 0
        %234 = vmatprep.subr.bf16.mxu0 0
        %235 = vmatpush1.bf16.msra.mxu0 0
        %236 = vmatprep.subr.bf16.mxu0 0
        %237 = vmatpush1.bf16.msra.mxu0 0
        %238 = vmatprep.subr.bf16.mxu0 0
        %239 = vmatpush1.bf16.msra.mxu0 0
        %240 = vmatprep.subr.bf16.mxu0 0
        %241 = vmatpush1.bf16.msra.mxu0 0
        %242 = vmatprep.subr.bf16.mxu0 0
        %243 = vmatpush1.bf16.msra.mxu0 0
        %244 = vmatprep.subr.bf16.mxu0 0
        %245 = vmatpush1.bf16.msra.mxu0 0
        %246 = vmatprep.subr.bf16.mxu0 0
        %247 = vmatpush1.bf16.msra.mxu0 0
        %248 = vmatprep.subr.bf16.mxu0 0
        %249 = vmatpush1.bf16.msra.mxu0 0
        %250 = vmatprep.subr.bf16.mxu0 0
        %251 = vmatpush1.bf16.msra.mxu0 0
        %252 = vmatprep.subr.bf16.mxu0 0
        %253 = vmatpush1.bf16.msra.mxu0 0
        %254 = vmatprep.subr.bf16.mxu0 0
        %255 = vmatpush1.bf16.msra.mxu0 0
        %256 = vmatprep.subr.bf16.mxu0 0
        %257 = vmatpush1.bf16.msra.mxu0 0
        %258 = vmatprep.mubr.bf16.mxu0 0
        %259 = vmatmul.mubr.bf16.gmra.mrb[0].mxu0 %v221
        %v260 = vpop.f32.mrb[0].mxu0
        %v261 = vadd.f32 0.0, %v260
        %v262 = vpop.f32.mrb[0].mxu0
        %v263 = vadd.f32 0.0, %v262
        %v264 = vpop.f32.mrb[0].mxu0
        %v265 = vadd.f32 0.0, %v264
        %v266 = vpop.f32.mrb[0].mxu0
        %v267 = vadd.f32 0.0, %v266
        %268 = vmatprep.mubr.bf16.mxu0 0
        %269 = vmatmul.mubr.bf16.gmra.mrb[0].mxu0 %v224
        %v270 = vpop.f32.mrb[0].mxu0
        %v271 = vadd.f32 0.0, %v270
        %v272 = vpop.f32.mrb[0].mxu0
        %v273 = vadd.f32 0.0, %v272
        %v274 = vpop.f32.mrb[0].mxu0
        %v275 = vadd.f32 0.0, %v274
        %v276 = vpop.f32.mrb[0].mxu0
        %v277 = vadd.f32 0.0, %v276
        %278 = vdwg.mxu0
        %v279 = vpack.c.bf16 %v265, %v261
        %v280 = vpack.c.bf16 %v267, %v263
        %v281 = vpack.c.bf16 %v275, %v271
        %v282 = vpack.c.bf16 %v277, %v273
        %283 = vst [vmem:[#allocation2] sm:$0xff] %v279
        %284 = vst [vmem:[#allocation2 + $0x8] sm:$0xff] %v280
        %285 = vst [vmem:[#allocation2 + $0x10] sm:$0xff] %v281
        %286 = vst [vmem:[#allocation2 + $0x18] sm:$0xff] %v282
        %v287 = vld [vmem:[%s2] sm:$0xf]
        %v288 = vld [vmem:[%s2 + $0x4] sm:$0xf]
        %v289 = vld [vmem:[%s2 + $0x8] sm:$0xf]
        %v290 = vld [vmem:[%s2 + $0xc] sm:$0xf]
        %v291 = vld [vmem:[#allocation2] sm:$0xff]
        %v292 = vld [vmem:[#allocation2 + $0x8] sm:$0xff]
        %v297 = vunpack.c.l.b16 %v287
        %v298 = vunpack.c.l.b16 %v288
        %v299 = vunpack.c.l.b16 %v289
        %v300 = vunpack.c.l.b16 %v290
        %v301 = vpack.c.b16 %v298, %v297
        %v302 = vpack.c.b16 %v300, %v299
        %v304 = vsel %vm219, %v301, 0
        %v307 = vsel %vm219, %v302, 0
        %309 = vmatprep.subr.bf16.mxu0 %v292
        %310 = vmatpush1.bf16.msra.mxu0 %v291
        %311 = vmatprep.subr.bf16.mxu0 0
        %312 = vmatpush1.bf16.msra.mxu0 0
        %313 = vmatprep.subr.bf16.mxu0 0
        %314 = vmatpush1.bf16.msra.mxu0 0
        %315 = vmatprep.subr.bf16.mxu0 0
        %316 = vmatpush1.bf16.msra.mxu0 0
        %317 = vmatprep.subr.bf16.mxu0 0
        %318 = vmatpush1.bf16.msra.mxu0 0
        %319 = vmatprep.subr.bf16.mxu0 0
        %320 = vmatpush1.bf16.msra.mxu0 0
        %321 = vmatprep.subr.bf16.mxu0 0
        %322 = vmatpush1.bf16.msra.mxu0 0
        %323 = vmatprep.subr.bf16.mxu0 0
        %324 = vmatpush1.bf16.msra.mxu0 0
        %325 = vmatprep.subr.bf16.mxu0 0
        %326 = vmatpush1.bf16.msra.mxu0 0
        %327 = vmatprep.subr.bf16.mxu0 0
        %328 = vmatpush1.bf16.msra.mxu0 0
        %329 = vmatprep.subr.bf16.mxu0 0
        %330 = vmatpush1.bf16.msra.mxu0 0
        %331 = vmatprep.subr.bf16.mxu0 0
        %332 = vmatpush1.bf16.msra.mxu0 0
        %333 = vmatprep.subr.bf16.mxu0 0
        %334 = vmatpush1.bf16.msra.mxu0 0
        %335 = vmatprep.subr.bf16.mxu0 0
        %336 = vmatpush1.bf16.msra.mxu0 0
        %337 = vmatprep.subr.bf16.mxu0 0
        %338 = vmatpush1.bf16.msra.mxu0 0
        %339 = vmatprep.subr.bf16.mxu0 0
        %340 = vmatpush1.bf16.msra.mxu0 0
        %341 = vmatprep.mubr.bf16.mxu0 0
        %342 = vmatmul.mubr.bf16.gmra.mrb[0].mxu0 %v304
        %v343 = vpop.f32.mrb[0].mxu0
        %v344 = vadd.f32 0.0, %v343
        %v345 = vpop.f32.mrb[0].mxu0
        %v346 = vadd.f32 0.0, %v345
        %v347 = vpop.f32.mrb[0].mxu0
        %v348 = vadd.f32 0.0, %v347
        %v349 = vpop.f32.mrb[0].mxu0
        %v350 = vadd.f32 0.0, %v349
        %351 = vmatprep.mubr.bf16.mxu0 0
        %352 = vmatmul.mubr.bf16.gmra.mrb[0].mxu0 %v307
        %v353 = vpop.f32.mrb[0].mxu0
        %v354 = vadd.f32 0.0, %v353
        %v355 = vpop.f32.mrb[0].mxu0
        %v356 = vadd.f32 0.0, %v355
        %v357 = vpop.f32.mrb[0].mxu0
        %v358 = vadd.f32 0.0, %v357
        %v359 = vpop.f32.mrb[0].mxu0
        %v360 = vadd.f32 0.0, %v359
        %361 = vdwg.mxu0
        %v362 = vsub.f32 %v344, %v356
        %v363 = vsub.f32 %v348, %v360
        %v364 = vadd.f32 %v346, %v354
        %v365 = vadd.f32 %v350, %v358
        %366 = vst [vmem:[%s189] sm:$0xff] %v362
        %367 = vst [vmem:[%s189 + $0x10] sm:$0xff] %v363
        %368 = vst [vmem:[%s189 + $0x8] sm:$0xff] %v364
        %369 = vst [vmem:[%s189 + $0x18] sm:$0xff] %v365
        %s370 = scalar_lea.vmem [#allocation2], 16
        %v371 = vld [vmem:[%s370] sm:$0xff]
        %v372 = vld [vmem:[%s370 + $0x8] sm:$0xff]
        %373 = vmatprep.subr.bf16.mxu0 %v372
        %374 = vmatpush1.bf16.msra.mxu0 %v371
        %375 = vmatprep.subr.bf16.mxu0 0
        %376 = vmatpush1.bf16.msra.mxu0 0
        %377 = vmatprep.subr.bf16.mxu0 0
        %378 = vmatpush1.bf16.msra.mxu0 0
        %379 = vmatprep.subr.bf16.mxu0 0
        %380 = vmatpush1.bf16.msra.mxu0 0
        %381 = vmatprep.subr.bf16.mxu0 0
        %382 = vmatpush1.bf16.msra.mxu0 0
        %383 = vmatprep.subr.bf16.mxu0 0
        %384 = vmatpush1.bf16.msra.mxu0 0
        %385 = vmatprep.subr.bf16.mxu0 0
        %386 = vmatpush1.bf16.msra.mxu0 0
        %387 = vmatprep.subr.bf16.mxu0 0
        %388 = vmatpush1.bf16.msra.mxu0 0
        %389 = vmatprep.subr.bf16.mxu0 0
        %390 = vmatpush1.bf16.msra.mxu0 0
        %391 = vmatprep.subr.bf16.mxu0 0
        %392 = vmatpush1.bf16.msra.mxu0 0
        %393 = vmatprep.subr.bf16.mxu0 0
        %394 = vmatpush1.bf16.msra.mxu0 0
        %395 = vmatprep.subr.bf16.mxu0 0
        %396 = vmatpush1.bf16.msra.mxu0 0
        %397 = vmatprep.subr.bf16.mxu0 0
        %398 = vmatpush1.bf16.msra.mxu0 0
        %399 = vmatprep.subr.bf16.mxu0 0
        %400 = vmatpush1.bf16.msra.mxu0 0
        %401 = vmatprep.subr.bf16.mxu0 0
        %402 = vmatpush1.bf16.msra.mxu0 0
        %403 = vmatprep.subr.bf16.mxu0 0
        %404 = vmatpush1.bf16.msra.mxu0 0
        %405 = vmatprep.mubr.bf16.mxu0 0
        %406 = vmatmul.mubr.bf16.gmra.mrb[0].mxu0 %v304
        %v407 = vpop.f32.mrb[0].mxu0
        %v408 = vadd.f32 0.0, %v407
        %v409 = vpop.f32.mrb[0].mxu0
        %v410 = vadd.f32 0.0, %v409
        %v411 = vpop.f32.mrb[0].mxu0
        %v412 = vadd.f32 0.0, %v411
        %v413 = vpop.f32.mrb[0].mxu0
        %v414 = vadd.f32 0.0, %v413
        %415 = vmatprep.mubr.bf16.mxu0 0
        %416 = vmatmul.mubr.bf16.gmra.mrb[0].mxu0 %v307
        %v417 = vpop.f32.mrb[0].mxu0
        %v418 = vadd.f32 0.0, %v417
        %v419 = vpop.f32.mrb[0].mxu0
        %v420 = vadd.f32 0.0, %v419
        %v421 = vpop.f32.mrb[0].mxu0
        %v422 = vadd.f32 0.0, %v421
        %v423 = vpop.f32.mrb[0].mxu0
        %v424 = vadd.f32 0.0, %v423
        %425 = vdwg.mxu0
        %v426 = vsub.f32 %v408, %v420
        %v427 = vsub.f32 %v412, %v424
        %v428 = vadd.f32 %v410, %v418
        %v429 = vadd.f32 %v414, %v422
        %s430 = scalar_lea.vmem %s189, 32 [#allocation6]
        %431 = vst [vmem:[%s430] sm:$0xff] %v426
        %432 = vst [vmem:[%s430 + $0x10] sm:$0xff] %v427
        %433 = vst [vmem:[%s430 + $0x8] sm:$0xff] %v428
        %434 = vst [vmem:[%s430 + $0x18] sm:$0xff] %v429
        %s435 = sand.u32 %s96, 1
        %s436 = scalar_lea.sflag [#allocation5], %s435
        %s437 = sand.u32 %s96, 1
        %s438 = smul.addr %s437, 64
        %s439 = scalar_lea.vmem [#allocation6], %s438
        // Predicated region
        $region37: #{tpu_custom_call.1} parent=31 // pred_check
          %p440 = pneg %p106
        $region38: #{tpu_custom_call.1} parent=31 // pred_check_branch
          %442 = sbr.rel (%p440) target = $region40
        $region39: #{tpu_custom_call.1} parent=31 // pred_region
          %s443 = smul.u32 2, %s20
          %s445 = ssub.s32 1024, 1024
          %446 = vsyncadd %s436, %s445
          %s447 = smul.addr %s443, 4
          %s448 = smul.addr %s447, 128
          %s449 = scalar_lea.hbm %s3, %s448
          %s450 = sshll.u32 %s439, 4
          %s451 = int_to_ptr.vmem [resolvable:$true] %s450
          %456 = dma.vmem_to_hbm [thread:$0]  %s451, 1024, %s449, %s436, 256, 256, 16
        $region40: #{tpu_custom_call.1} parent=31 // pred_fallthru
          _
      $region32: #{tpu_custom_call.1} parent=5 // pred_fallthru
        _
      %p457 = scmp.le.s32.totalorder 2, %s15
      // Predicated region
      $region41: #{tpu_custom_call.1} parent=5 // pred_check
        %p458 = pneg %p457
      $region42: #{tpu_custom_call.1} parent=5 // pred_check_branch
        %460 = sbr.rel (%p458) target = $region44
      $region43: #{tpu_custom_call.1} parent=5 // pred_region
        %s461 = ssub.s32 %s15, 2
        // Predicated region
        $region45: #{tpu_custom_call.1} parent=43 // pred_check
          %p462 = pneg %p112
        $region46: #{tpu_custom_call.1} parent=43 // pred_check_branch
          %464 = sbr.rel (%p462) target = $region48
        $region47: #{tpu_custom_call.1} parent=43 // pred_region
          %s465 = sand.u32 %s97, 1
          %s466 = scalar_lea.sflag [#allocation5], %s465
          %s467 = sand.u32 %s97, 1
          %s468 = smul.addr %s467, 64
          %s469 = scalar_lea.vmem [#allocation6], %s468
          %470 = dma.done %s466, 1024
        $region48: #{tpu_custom_call.1} parent=43 // pred_fallthru
          _
      $region44: #{tpu_custom_call.1} parent=5 // pred_fallthru
        _
    $region6: #{tpu_custom_call.1} parent=1 // loop_footer
      %s19 = sadd.s32 1, %s15
    $region7: #{tpu_custom_call.1} parent=1 // loop_footer_branch
      %14 = sbr.rel target = $region3
    $region8: #{tpu_custom_call.1} parent=1 // loop_exit
      _
    %471 = vsyncpa [#allocation4], 1
    %s472 = scalar_lea.sflag [#allocation4], 1
    %473 = vsyncpa %s472, 1
    %474 = vsyncpa [#allocation5], 1
    %s475 = scalar_lea.sflag [#allocation5], 1
    %476 = vsyncpa %s475, 1

// kernel: tpu_custom_call.1
$region0: #{tpu_custom_call.1}
  #allocation0 [shape = 'u32[]', space=smem, size = 0x4, offset = 0x4, fixed_abs, tag = 'smem constant byte address 0x4 - core index']
  #allocation1 [shape = 'u32[144,128]{1,0:T(1,128)}', space=vmem, size = 0x12000, scoped, tag = 'internal scratch']
  #allocation2 [shape = 'bf16[2,16,256]{2,1,0:T(16,128)(2,1)}', space=vmem, size = 0x4000, scoped, tag = 'scratch operand']
  %s0 = inlined_call_operand.hbm [shape: bf16[8,16,16], index: 0, kind: input, shape index: {}]
  %s1 = inlined_call_operand.vmem [shape: bf16[16,256], index: 1, kind: input, shape index: {}]
  %s2 = inlined_call_operand.vmem [shape: bf16[32,16], index: 2, kind: input, shape index: {}]
  %s3 = inlined_call_operand.hbm [shape: f32[8,16,256], index: 3, kind: output, shape index: {}]
  %s4 = sld [smem:[#allocation0]]
  $region49: #{tpu_custom_call.1} parent=0
    _
  %s6 = ssub.s32 1, %s4
  %s7 = scalar_select 0, %s6, %s4
  $region1: #{tpu_custom_call.1} parent=0
    #allocation3 [shape = 'u8[16384]{0}', space=vmem, size = 0x4000, scoped, tag = 'input window, operand 0']
    #allocation4 [shape = 's32[2]{0}', space=sflag, size = 0x8, scoped, tag = 'scoped memory for tpu_custom_call.1']
    #allocation5 [shape = 's32[2]{0}', space=sflag, size = 0x8, scoped, tag = 'scoped memory for tpu_custom_call.1']
    #allocation6 [shape = 'u8[65536]{0}', space=vmem, size = 0x10000, scoped, tag = 'output window, operand 0']
    %8 = vsyncpa [#allocation4], 0
    %s9 = scalar_lea.sflag [#allocation4], 1
    %10 = vsyncpa %s9, 0
    %11 = vsyncpa [#allocation5], 0
    %s12 = scalar_lea.sflag [#allocation5], 1
    %13 = vsyncpa %s12, 0
    loop: start=0, step=1, limit=6
    $region2: #{tpu_custom_call.1} parent=1 // loop_pre_header
      _
    $region3: #{tpu_custom_call.1} parent=1 // loop_header
      %s15 = sphi 0, %s19
      %p16 = scmp.ge.s32.totalorder %s15, 6
      %s25 = sphi 0, %s27
      %s28 = sphi 0, %s25
      %s29 = sphi 0, %s28
      %s45 = sphi 0, %s29
      %s49 = sphi 0, %s49
      %s51 = sphi 0, %s49
      %s52 = sphi 0, %s51
      %s66 = sphi 0, %s52
      %s70 = sphi 0, %s70
      %s72 = sphi 0, %s70
      %s73 = sphi 0, %s72
      %s87 = sphi 0, %s73
      %s93 = sphi 0, %s95
      %s96 = sphi 0, %s93
      %s97 = sphi 0, %s96
      %s113 = sphi 0, %s97
    $region4: #{tpu_custom_call.1} parent=1 // loop_header_branch
      %18 = sbr.rel (%p16) target = $region8
    $region5: #{tpu_custom_call.1} parent=1 // loop_body
      %s20 = ssub.s32 %s15, 1
      %s21 = ssub.s32 %s15, 2
      %s22 = sadd.s32 %s15, 1
      %s23 = ssub.s32 %s15, %s22
      %p24 = scmp.eq.s32.totalorder %s23, 0
      %s26 = sadd.s32 %s25, 1
      %s27 = scalar_select %p24, %s25, %s26
      %p30 = pneg %p24
      %p31 = scmp.eq.s32.totalorder %s15, 3
      %p32 = por %p30, %p31
      %p33 = scmp.ne.s32.totalorder %s25, %s28
      %p34 = scmp.eq.s32.totalorder %s15, 0
      %p35 = por %p33, %p34
      %p36 = scmp.ne.s32.totalorder %s25, %s28
      %p37 = scmp.eq.s32.totalorder %s20, 3
      %p38 = por %p36, %p37
      %p39 = scmp.ne.s32.totalorder %s28, %s29
      %p40 = scmp.eq.s32.totalorder %s20, 0
      %p41 = por %p39, %p40
      %p42 = scmp.ne.s32.totalorder %s28, %s29
      %p43 = scmp.eq.s32.totalorder %s21, 3
      %p44 = por %p42, %p43
      %p46 = scmp.ne.s32.totalorder %s29, %s45
      %p47 = scmp.eq.s32.totalorder %s21, 0
      %p48 = por %p46, %p47
      %s50 = sadd.s32 %s49, 1
      %p53 = scmp.eq.s32.totalorder %s15, 3
      %p54 = scmp.ne.s32.totalorder %s49, %s51
      %p55 = scmp.eq.s32.totalorder %s15, 0
      %p56 = por %p54, %p55
      %p57 = scmp.ne.s32.totalorder %s49, %s51
      %p58 = scmp.eq.s32.totalorder %s20, 3
      %p59 = por %p57, %p58
      %p60 = scmp.ne.s32.totalorder %s51, %s52
      %p61 = scmp.eq.s32.totalorder %s20, 0
      %p62 = por %p60, %p61
      %p63 = scmp.ne.s32.totalorder %s51, %s52
      %p64 = scmp.eq.s32.totalorder %s21, 3
      %p65 = por %p63, %p64
      %p67 = scmp.ne.s32.totalorder %s52, %s66
      %p68 = scmp.eq.s32.totalorder %s21, 0
      %p69 = por %p67, %p68
      %s71 = sadd.s32 %s70, 1
      %p74 = scmp.eq.s32.totalorder %s15, 3
      %p75 = scmp.ne.s32.totalorder %s70, %s72
      %p76 = scmp.eq.s32.totalorder %s15, 0
      %p77 = por %p75, %p76
      %p78 = scmp.ne.s32.totalorder %s70, %s72
      %p79 = scmp.eq.s32.totalorder %s20, 3
      %p80 = por %p78, %p79
      %p81 = scmp.ne.s32.totalorder %s72, %s73
      %p82 = scmp.eq.s32.totalorder %s20, 0
      %p83 = por %p81, %p82
      %p84 = scmp.ne.s32.totalorder %s72, %s73
      %p85 = scmp.eq.s32.totalorder %s21, 3
      %p86 = por %p84, %p85
      %p88 = scmp.ne.s32.totalorder %s73, %s87
      %p89 = scmp.eq.s32.totalorder %s21, 0
      %p90 = por %p88, %p89
      %s91 = ssub.s32 %s15, %s22
      %p92 = scmp.eq.s32.totalorder %s91, 0
      %s94 = sadd.s32 %s93, 1
      %s95 = scalar_select %p92, %s93, %s94
      %p98 = pneg %p92
      %p99 = scmp.eq.s32.totalorder %s15, 3
      %p100 = por %p98, %p99
      %p101 = scmp.ne.s32.totalorder %s93, %s96
      %p102 = scmp.eq.s32.totalorder %s15, 0
      %p103 = por %p101, %p102
      %p104 = scmp.ne.s32.totalorder %s93, %s96
      %p105 = scmp.eq.s32.totalorder %s20, 3
      %p106 = por %p104, %p105
      %p107 = scmp.ne.s32.totalorder %s96, %s97
      %p108 = scmp.eq.s32.totalorder %s20, 0
      %p109 = por %p107, %p108
      %p110 = scmp.ne.s32.totalorder %s96, %s97
      %p111 = scmp.eq.s32.totalorder %s21, 3
      %p112 = por %p110, %p111
      %p114 = scmp.ne.s32.totalorder %s97, %s113
      %p115 = scmp.eq.s32.totalorder %s21, 0
      %p116 = por %p114, %p115
      %p117 = scmp.le.s32.totalorder 1, %s15
      %p118 = scmp.lt.s32.totalorder %s15, 5
      %p119 = pnand %p117, %p118
      %p120 = pneg %p119
      // Predicated region
      $region9: #{tpu_custom_call.1} parent=5 // pred_check
        _
      $region10: #{tpu_custom_call.1} parent=5 // pred_check_branch
        %122 = sbr.rel (%p119) target = $region12
      $region11: #{tpu_custom_call.1} parent=5 // pred_region
        %s123 = ssub.s32 %s15, 1
        // Predicated region
        $region13: #{tpu_custom_call.1} parent=11 // pred_check
          %p124 = pneg %p62
        $region14: #{tpu_custom_call.1} parent=11 // pred_check_branch
          %126 = sbr.rel (%p124) target = $region16
        $region15: #{tpu_custom_call.1} parent=11 // pred_region
          _
        $region16: #{tpu_custom_call.1} parent=11 // pred_fallthru
          _
        // Predicated region
        $region17: #{tpu_custom_call.1} parent=11 // pred_check
          %p127 = pneg %p83
        $region18: #{tpu_custom_call.1} parent=11 // pred_check_branch
          %129 = sbr.rel (%p127) target = $region20
        $region19: #{tpu_custom_call.1} parent=11 // pred_region
          _
        $region20: #{tpu_custom_call.1} parent=11 // pred_fallthru
          _
      $region12: #{tpu_custom_call.1} parent=5 // pred_fallthru
        _
      %p130 = scmp.lt.s32.totalorder %s15, 4
      // Predicated region
      $region21: #{tpu_custom_call.1} parent=5 // pred_check
        %p131 = pneg %p130
      $region22: #{tpu_custom_call.1} parent=5 // pred_check_branch
        %133 = sbr.rel (%p131) target = $region24
      $region23: #{tpu_custom_call.1} parent=5 // pred_region
        // Predicated region
        $region25: #{tpu_custom_call.1} parent=23 // pred_check
          %p134 = pneg %p35
        $region26: #{tpu_custom_call.1} parent=23 // pred_check_branch
          %136 = sbr.rel (%p134) target = $region28
        $region27: #{tpu_custom_call.1} parent=23 // pred_region
          %s137 = sand.u32 %s25, 1
          %s138 = scalar_lea.sflag [#allocation4], %s137
          %s139 = sand.u32 %s25, 1
          %s140 = smul.addr %s139, 16
          %s141 = scalar_lea.vmem [#allocation3], %s140
          %s142 = smul.u32 2, %s15
          %s144 = ssub.s32 256, 256
          %145 = vsyncadd %s138, %s144
          %s146 = smul.addr %s142, 2
          %s147 = smul.addr %s146, 64
          %s148 = scalar_lea.hbm %s0, %s147
          %s149 = sshll.u32 %s141, 4
          %s150 = int_to_ptr.vmem [resolvable:$true] %s149
          %155 = dma.hbm_to_vmem [thread:$0]  %s148, 256, %s150, %s138, 64, 64, 4
        $region28: #{tpu_custom_call.1} parent=23 // pred_fallthru
          _
      $region24: #{tpu_custom_call.1} parent=5 // pred_fallthru
        _
      %p156 = scmp.le.s32.totalorder 1, %s15
      %p157 = scmp.lt.s32.totalorder %s15, 5
      %p158 = pnand %p156, %p157
      %p159 = pneg %p158
      // Predicated region
      $region29: #{tpu_custom_call.1} parent=5 // pred_check
        _
      $region30: #{tpu_custom_call.1} parent=5 // pred_check_branch
        %161 = sbr.rel (%p158) target = $region32
      $region31: #{tpu_custom_call.1} parent=5 // pred_region
        %s162 = ssub.s32 %s15, 1
        %s163 = sand.u32 %s28, 1
        %s164 = scalar_lea.sflag [#allocation4], %s163
        %s165 = sand.u32 %s28, 1
        %s166 = smul.addr %s165, 16
        %s167 = scalar_lea.vmem [#allocation3], %s166
        // Predicated region
        $region33: #{tpu_custom_call.1} parent=31 // pred_check
          %p168 = pneg %p41
        $region34: #{tpu_custom_call.1} parent=31 // pred_check_branch
          %170 = sbr.rel (%p168) target = $region36
        $region35: #{tpu_custom_call.1} parent=31 // pred_region
          %171 = dma.done %s164, 256
        $region36: #{tpu_custom_call.1} parent=31 // pred_fallthru
          _
        %s172 = sand.u32 %s28, 1
        %s173 = scalar_lea.sflag [#allocation4], %s172
        %s174 = sand.u32 %s28, 1
        %s175 = smul.addr %s174, 16
        %s176 = scalar_lea.vmem [#allocation3], %s175
        %p177 = pneg %p41
        %p178 = pneg %p38
        %p179 = pneg %p62
        %p180 = pneg %p59
        %p181 = pneg %p83
        %p182 = pneg %p80
        %p183 = pneg %p109
        %p184 = pneg %p106
        %s185 = sand.u32 %s96, 1
        %s186 = scalar_lea.sflag [#allocation5], %s185
        %s187 = sand.u32 %s96, 1
        %s188 = smul.addr %s187, 64
        %s189 = scalar_lea.vmem [#allocation6], %s188
        %s190 = smul.u32 2, %s20
        %s191 = smul.u32 2, %s20
        %v193 = vld [vmem:[%s167] sm:$0xf]
        %v194 = vld [vmem:[%s167 + $0x4] sm:$0xf]
        %v195 = vld [vmem:[%s167 + $0x8] sm:$0xf]
        %v196 = vld [vmem:[%s167 + $0xc] sm:$0xf]
        %v197 = vld [vmem:[%s1] sm:$0xff]
        %v198 = vld [vmem:[%s1 + $0x8] sm:$0xff]
        %v203 = vunpack.c.l.b16 %v193
        %v204 = vunpack.c.l.b16 %v194
        %v205 = vunpack.c.l.b16 %v195
        %v206 = vunpack.c.l.b16 %v196
        %v207 = vpack.c.b16 %v204, %v203
        %v208 = vpack.c.b16 %v206, %v205
        %v211 = vunpack.c.l.b16 %v197
        %v212 = vunpack.c.h.b16 %v197
        %v213 = vunpack.c.l.b16 %v198
        %v214 = vunpack.c.h.b16 %v198
        %v215 = vpack.c.b16 %v213, %v211
        %v216 = vpack.c.b16 %v214, %v212
        %vm219 = vcmask 130048
        %v221 = vsel %vm219, %v207, 0
        %v224 = vsel %vm219, %v208, 0
        %226 = vmatprep.subr.bf16.mxu0 %v216
        %227 = vmatpush1.bf16.msra.mxu0 %v215
        %228 = vmatprep.subr.bf16.mxu0 0
        %229 = vmatpush1.bf16.msra.mxu0 0
        %230 = vmatprep.subr.bf16.mxu0 0
        %231 = vmatpush1.bf16.msra.mxu0 0
        %232 = vmatprep.subr.bf16.mxu0 0
        %233 = vmatpush1.bf16.msra.mxu0 0
        %234 = vmatprep.subr.bf16.mxu0 0
        %235 = vmatpush1.bf16.msra.mxu0 0
        %236 = vmatprep.subr.bf16.mxu0 0
        %237 = vmatpush1.bf16.msra.mxu0 0
        %238 = vmatprep.subr.bf16.mxu0 0
        %239 = vmatpush1.bf16.msra.mxu0 0
        %240 = vmatprep.subr.bf16.mxu0 0
        %241 = vmatpush1.bf16.msra.mxu0 0
        %242 = vmatprep.subr.bf16.mxu0 0
        %243 = vmatpush1.bf16.msra.mxu0 0
        %244 = vmatprep.subr.bf16.mxu0 0
        %245 = vmatpush1.bf16.msra.mxu0 0
        %246 = vmatprep.subr.bf16.mxu0 0
        %247 = vmatpush1.bf16.msra.mxu0 0
        %248 = vmatprep.subr.bf16.mxu0 0
        %249 = vmatpush1.bf16.msra.mxu0 0
        %250 = vmatprep.subr.bf16.mxu0 0
        %251 = vmatpush1.bf16.msra.mxu0 0
        %252 = vmatprep.subr.bf16.mxu0 0
        %253 = vmatpush1.bf16.msra.mxu0 0
        %254 = vmatprep.subr.bf16.mxu0 0
        %255 = vmatpush1.bf16.msra.mxu0 0
        %256 = vmatprep.subr.bf16.mxu0 0
        %257 = vmatpush1.bf16.msra.mxu0 0
        %258 = vmatprep.mubr.bf16.mxu0 0
        %259 = vmatmul.mubr.bf16.gmra.mrb[0].mxu0 %v221
        %v260 = vpop.f32.mrb[0].mxu0
        %v261 = vadd.f32 0.0, %v260
        %v262 = vpop.f32.mrb[0].mxu0
        %v263 = vadd.f32 0.0, %v262
        %v264 = vpop.f32.mrb[0].mxu0
        %v265 = vadd.f32 0.0, %v264
        %v266 = vpop.f32.mrb[0].mxu0
        %v267 = vadd.f32 0.0, %v266
        %268 = vmatprep.mubr.bf16.mxu0 0
        %269 = vmatmul.mubr.bf16.gmra.mrb[0].mxu0 %v224
        %v270 = vpop.f32.mrb[0].mxu0
        %v271 = vadd.f32 0.0, %v270
        %v272 = vpop.f32.mrb[0].mxu0
        %v273 = vadd.f32 0.0, %v272
        %v274 = vpop.f32.mrb[0].mxu0
        %v275 = vadd.f32 0.0, %v274
        %v276 = vpop.f32.mrb[0].mxu0
        %v277 = vadd.f32 0.0, %v276
        %278 = vdwg.mxu0
        %v279 = vpack.c.bf16 %v265, %v261
        %v280 = vpack.c.bf16 %v267, %v263
        %v281 = vpack.c.bf16 %v275, %v271
        %v282 = vpack.c.bf16 %v277, %v273
        %283 = vst [vmem:[#allocation2] sm:$0xff] %v279
        %284 = vst [vmem:[#allocation2 + $0x8] sm:$0xff] %v280
        %285 = vst [vmem:[#allocation2 + $0x10] sm:$0xff] %v281
        %286 = vst [vmem:[#allocation2 + $0x18] sm:$0xff] %v282
        %v287 = vld [vmem:[%s2] sm:$0xf]
        %v288 = vld [vmem:[%s2 + $0x4] sm:$0xf]
        %v289 = vld [vmem:[%s2 + $0x8] sm:$0xf]
        %v290 = vld [vmem:[%s2 + $0xc] sm:$0xf]
        %v291 = vld [vmem:[#allocation2] sm:$0xff]
        %v292 = vld [vmem:[#allocation2 + $0x8] sm:$0xff]
        %v297 = vunpack.c.l.b16 %v287
        %v298 = vunpack.c.l.b16 %v288
        %v299 = vunpack.c.l.b16 %v289
        %v300 = vunpack.c.l.b16 %v290
        %v301 = vpack.c.b16 %v298, %v297
        %v302 = vpack.c.b16 %v300, %v299
        %v304 = vsel %vm219, %v301, 0
        %v307 = vsel %vm219, %v302, 0
        %309 = vmatprep.subr.bf16.mxu0 %v292
        %310 = vmatpush1.bf16.msra.mxu0 %v291
        %311 = vmatprep.subr.bf16.mxu0 0
        %312 = vmatpush1.bf16.msra.mxu0 0
        %313 = vmatprep.subr.bf16.mxu0 0
        %314 = vmatpush1.bf16.msra.mxu0 0
        %315 = vmatprep.subr.bf16.mxu0 0
        %316 = vmatpush1.bf16.msra.mxu0 0
        %317 = vmatprep.subr.bf16.mxu0 0
        %318 = vmatpush1.bf16.msra.mxu0 0
        %319 = vmatprep.subr.bf16.mxu0 0
        %320 = vmatpush1.bf16.msra.mxu0 0
        %321 = vmatprep.subr.bf16.mxu0 0
        %322 = vmatpush1.bf16.msra.mxu0 0
        %323 = vmatprep.subr.bf16.mxu0 0
        %324 = vmatpush1.bf16.msra.mxu0 0
        %325 = vmatprep.subr.bf16.mxu0 0
        %326 = vmatpush1.bf16.msra.mxu0 0
        %327 = vmatprep.subr.bf16.mxu0 0
        %328 = vmatpush1.bf16.msra.mxu0 0
        %329 = vmatprep.subr.bf16.mxu0 0
        %330 = vmatpush1.bf16.msra.mxu0 0
        %331 = vmatprep.subr.bf16.mxu0 0
        %332 = vmatpush1.bf16.msra.mxu0 0
        %333 = vmatprep.subr.bf16.mxu0 0
        %334 = vmatpush1.bf16.msra.mxu0 0
        %335 = vmatprep.subr.bf16.mxu0 0
        %336 = vmatpush1.bf16.msra.mxu0 0
        %337 = vmatprep.subr.bf16.mxu0 0
        %338 = vmatpush1.bf16.msra.mxu0 0
        %339 = vmatprep.subr.bf16.mxu0 0
        %340 = vmatpush1.bf16.msra.mxu0 0
        %341 = vmatprep.mubr.bf16.mxu0 0
        %342 = vmatmul.mubr.bf16.gmra.mrb[0].mxu0 %v304
        %v343 = vpop.f32.mrb[0].mxu0
        %v344 = vadd.f32 0.0, %v343
        %v345 = vpop.f32.mrb[0].mxu0
        %v346 = vadd.f32 0.0, %v345
        %v347 = vpop.f32.mrb[0].mxu0
        %v348 = vadd.f32 0.0, %v347
        %v349 = vpop.f32.mrb[0].mxu0
        %v350 = vadd.f32 0.0, %v349
        %351 = vmatprep.mubr.bf16.mxu0 0
        %352 = vmatmul.mubr.bf16.gmra.mrb[0].mxu0 %v307
        %v353 = vpop.f32.mrb[0].mxu0
        %v354 = vadd.f32 0.0, %v353
        %v355 = vpop.f32.mrb[0].mxu0
        %v356 = vadd.f32 0.0, %v355
        %v357 = vpop.f32.mrb[0].mxu0
        %v358 = vadd.f32 0.0, %v357
        %v359 = vpop.f32.mrb[0].mxu0
        %v360 = vadd.f32 0.0, %v359
        %361 = vdwg.mxu0
        %v362 = vsub.f32 %v344, %v356
        %v363 = vsub.f32 %v348, %v360
        %v364 = vadd.f32 %v346, %v354
        %v365 = vadd.f32 %v350, %v358
        %366 = vst [vmem:[%s189] sm:$0xff] %v362
        %367 = vst [vmem:[%s189 + $0x10] sm:$0xff] %v363
        %368 = vst [vmem:[%s189 + $0x8] sm:$0xff] %v364
        %369 = vst [vmem:[%s189 + $0x18] sm:$0xff] %v365
        %s370 = scalar_lea.vmem [#allocation2], 16
        %v371 = vld [vmem:[%s370] sm:$0xff]
        %v372 = vld [vmem:[%s370 + $0x8] sm:$0xff]
        %373 = vmatprep.subr.bf16.mxu0 %v372
        %374 = vmatpush1.bf16.msra.mxu0 %v371
        %375 = vmatprep.subr.bf16.mxu0 0
        %376 = vmatpush1.bf16.msra.mxu0 0
        %377 = vmatprep.subr.bf16.mxu0 0
        %378 = vmatpush1.bf16.msra.mxu0 0
        %379 = vmatprep.subr.bf16.mxu0 0
        %380 = vmatpush1.bf16.msra.mxu0 0
        %381 = vmatprep.subr.bf16.mxu0 0
        %382 = vmatpush1.bf16.msra.mxu0 0
        %383 = vmatprep.subr.bf16.mxu0 0
        %384 = vmatpush1.bf16.msra.mxu0 0
        %385 = vmatprep.subr.bf16.mxu0 0
        %386 = vmatpush1.bf16.msra.mxu0 0
        %387 = vmatprep.subr.bf16.mxu0 0
        %388 = vmatpush1.bf16.msra.mxu0 0
        %389 = vmatprep.subr.bf16.mxu0 0
        %390 = vmatpush1.bf16.msra.mxu0 0
        %391 = vmatprep.subr.bf16.mxu0 0
        %392 = vmatpush1.bf16.msra.mxu0 0
        %393 = vmatprep.subr.bf16.mxu0 0
        %394 = vmatpush1.bf16.msra.mxu0 0
        %395 = vmatprep.subr.bf16.mxu0 0
        %396 = vmatpush1.bf16.msra.mxu0 0
        %397 = vmatprep.subr.bf16.mxu0 0
        %398 = vmatpush1.bf16.msra.mxu0 0
        %399 = vmatprep.subr.bf16.mxu0 0
        %400 = vmatpush1.bf16.msra.mxu0 0
        %401 = vmatprep.subr.bf16.mxu0 0
        %402 = vmatpush1.bf16.msra.mxu0 0
        %403 = vmatprep.subr.bf16.mxu0 0
        %404 = vmatpush1.bf16.msra.mxu0 0
        %405 = vmatprep.mubr.bf16.mxu0 0
        %406 = vmatmul.mubr.bf16.gmra.mrb[0].mxu0 %v304
        %v407 = vpop.f32.mrb[0].mxu0
        %v408 = vadd.f32 0.0, %v407
        %v409 = vpop.f32.mrb[0].mxu0
        %v410 = vadd.f32 0.0, %v409
        %v411 = vpop.f32.mrb[0].mxu0
        %v412 = vadd.f32 0.0, %v411
        %v413 = vpop.f32.mrb[0].mxu0
        %v414 = vadd.f32 0.0, %v413
        %415 = vmatprep.mubr.bf16.mxu0 0
        %416 = vmatmul.mubr.bf16.gmra.mrb[0].mxu0 %v307
        %v417 = vpop.f32.mrb[0].mxu0
        %v418 = vadd.f32 0.0, %v417
        %v419 = vpop.f32.mrb[0].mxu0
        %v420 = vadd.f32 0.0, %v419
        %v421 = vpop.f32.mrb[0].mxu0
        %v422 = vadd.f32 0.0, %v421
        %v423 = vpop.f32.mrb[0].mxu0
        %v424 = vadd.f32 0.0, %v423
        %425 = vdwg.mxu0
        %v426 = vsub.f32 %v408, %v420
        %v427 = vsub.f32 %v412, %v424
        %v428 = vadd.f32 %v410, %v418
        %v429 = vadd.f32 %v414, %v422
        %s430 = scalar_lea.vmem %s189, 32 [#allocation6]
        %431 = vst [vmem:[%s430] sm:$0xff] %v426
        %432 = vst [vmem:[%s430 + $0x10] sm:$0xff] %v427
        %433 = vst [vmem:[%s430 + $0x8] sm:$0xff] %v428
        %434 = vst [vmem:[%s430 + $0x18] sm:$0xff] %v429
        %s435 = sand.u32 %s96, 1
        %s436 = scalar_lea.sflag [#allocation5], %s435
        %s437 = sand.u32 %s96, 1
        %s438 = smul.addr %s437, 64
        %s439 = scalar_lea.vmem [#allocation6], %s438
        // Predicated region
        $region37: #{tpu_custom_call.1} parent=31 // pred_check
          %p440 = pneg %p106
        $region38: #{tpu_custom_call.1} parent=31 // pred_check_branch
          %442 = sbr.rel (%p440) target = $region40
        $region39: #{tpu_custom_call.1} parent=31 // pred_region
          %s443 = smul.u32 2, %s20
          %s445 = ssub.s32 1024, 1024
          %446 = vsyncadd %s436, %s445
          %s447 = smul.addr %s443, 4
          %s448 = smul.addr %s447, 128
          %s449 = scalar_lea.hbm %s3, %s448
          %s450 = sshll.u32 %s439, 4
          %s451 = int_to_ptr.vmem [resolvable:$true] %s450
          %456 = dma.vmem_to_hbm [thread:$0]  %s451, 1024, %s449, %s436, 256, 256, 16
        $region40: #{tpu_custom_call.1} parent=31 // pred_fallthru
          _
      $region32: #{tpu_custom_call.1} parent=5 // pred_fallthru
        _
      %p457 = scmp.le.s32.totalorder 2, %s15
      // Predicated region
      $region41: #{tpu_custom_call.1} parent=5 // pred_check
        %p458 = pneg %p457
      $region42: #{tpu_custom_call.1} parent=5 // pred_check_branch
        %460 = sbr.rel (%p458) target = $region44
      $region43: #{tpu_custom_call.1} parent=5 // pred_region
        %s461 = ssub.s32 %s15, 2
        // Predicated region
        $region45: #{tpu_custom_call.1} parent=43 // pred_check
          %p462 = pneg %p112
        $region46: #{tpu_custom_call.1} parent=43 // pred_check_branch
          %464 = sbr.rel (%p462) target = $region48
        $region47: #{tpu_custom_call.1} parent=43 // pred_region
          %s465 = sand.u32 %s97, 1
          %s466 = scalar_lea.sflag [#allocation5], %s465
          %s467 = sand.u32 %s97, 1
          %s468 = smul.addr %s467, 64
          %s469 = scalar_lea.vmem [#allocation6], %s468
          %470 = dma.done %s466, 1024
        $region48: #{tpu_custom_call.1} parent=43 // pred_fallthru
          _
      $region44: #{tpu_custom_call.1} parent=5 // pred_fallthru
        _
    $region6: #{tpu_custom_call.1} parent=1 // loop_footer
      %s19 = sadd.s32 1, %s15
    $region7: #{tpu_custom_call.1} parent=1 // loop_footer_branch
      %14 = sbr.rel target = $region3
    $region8: #{tpu_custom_call.1} parent=1 // loop_exit
      _
    %471 = vsyncpa [#allocation4], 1
    %s472 = scalar_lea.sflag [#allocation4], 1
    %473 = vsyncpa %s472, 1
    %474 = vsyncpa [#allocation5], 1
    %s475 = scalar_lea.sflag [#allocation5], 1
    %476 = vsyncpa %s475, 1

</llo_original>
